<compile_context>
chip_gen: v7x
topology: tpu7x:2x2x1
jax: 0.10.0
libtpu: 0.0.40
codegen_flags: <defaults>
</compile_context>

<pallas_src>
import jax
import jax.numpy as jnp
from jax import lax
from jax.experimental import pallas as pl
from jax.experimental.pallas import tpu as pltpu

_LANES = 128
_SUBLANES = 8
_SUB_ROWS = 512                      # inner compute sub-tile (rows)
_TARGET_BLOCK_BYTES = 4 * 1024 * 1024  # per-input, per-pipeline-buffer
_NUM_CORE_CHUNKS = 2                 # v7x has 2 TensorCores; harmless elsewhere
_VMEM_LIMIT_BYTES = 40 * 1024 * 1024


def _make_rmsle_sumsq_kernel(total_rows: int, block_rows: int, sub_rows: int):
    """Kernel computing per-chunk (8,128) partial sums of (log1p(p)-log1p(t))^2."""
    n_sub = block_rows // sub_rows

    def kernel(p_ref, t_ref, o_ref):
        c = pl.program_id(0)                       # core-chunk index ("parallel")
        i = pl.program_id(1)                       # block index within chunk
        b = c * pl.num_programs(1) + i             # logical block id (may be 1 past end)

        @pl.when(i == 0)
        def _():
            o_ref[...] = jnp.zeros_like(o_ref)

        def accumulate(masked: bool):
            def body(j, acc):
                r0 = pl.multiple_of(j * sub_rows, sub_rows)
                p = p_ref[pl.ds(r0, sub_rows), :].astype(jnp.float32)
                t = t_ref[pl.ds(r0, sub_rows), :].astype(jnp.float32)
                # log1p(p) - log1p(t) == log((1+p)/(1+t)): one EUP log + one
                # divide instead of two log1p expansions.  Same NaN/-inf
                # behavior as the PyTorch reference for inputs <= -1.
                d = jnp.log((1.0 + p) / (1.0 + t))
                sq = d * d
                if masked:
                    # Row-index based mask (no flat-index int32 overflow);
                    # only taken for blocks overlapping the end of the rows.
                    rid = lax.broadcasted_iota(jnp.int32, (sub_rows, _LANES), 0)
                    valid = (b * block_rows + j * sub_rows + rid) < total_rows
                    sq = jnp.where(valid, sq, 0.0)
                # Fold the sub-tile's vregs with pure VPU adds; cross-lane
                # reduction is deferred to the wrapper.
                return acc + jnp.sum(
                    sq.reshape(sub_rows // _SUBLANES, _SUBLANES, _LANES), axis=0)

            acc = lax.fori_loop(0, n_sub, body,
                                jnp.zeros((_SUBLANES, _LANES), jnp.float32))
            o_ref[0] += acc

        fully_valid = (b + 1) * block_rows <= total_rows

        @pl.when(fully_valid)
        def _():
            accumulate(masked=False)        # fast unmasked hot path

        @pl.when(jnp.logical_not(fully_valid))
        def _():
            accumulate(masked=True)         # only boundary / phantom blocks

    return kernel


def rmsle_loss(predict: jax.Array, target: jax.Array) -> jax.Array:
    """RMSLE over all elements of predict/target (same shape)."""
    assert predict.shape == target.shape
    total_n = predict.size
    assert total_n > 0

    flat_p = predict.reshape(-1)
    flat_t = target.reshape(-1)

    itemsize = jnp.dtype(predict.dtype).itemsize
    packing = max(1, 4 // itemsize)               # sublane packing for <32-bit dtypes
    chunk = _SUBLANES * packing * _LANES          # 1024 (f32) / 2048 (bf16)
    aligned_n = (total_n // chunk) * chunk        # kernel consumes this prefix

    sum_sq = jnp.zeros((), jnp.float32)

    if aligned_n > 0:
        rows = aligned_n // _LANES
        p2 = flat_p[:aligned_n].reshape(rows, _LANES)
        t2 = flat_t[:aligned_n].reshape(rows, _LANES)

        # ~4 MiB per input buffer, rounded to a multiple of the sub-tile.
        target_rows = max(
            _SUB_ROWS,
            (_TARGET_BLOCK_BYTES // (_LANES * itemsize)) // _SUB_ROWS * _SUB_ROWS)
        if rows >= _SUB_ROWS:
            block_rows = min(target_rows, (rows // _SUB_ROWS) * _SUB_ROWS)
            sub_rows = _SUB_ROWS
        else:
            block_rows = rows
            sub_rows = rows

        blocks_total = pl.cdiv(rows, block_rows)
        num_chunks = min(_NUM_CORE_CHUNKS, blocks_total)
        blocks_per_chunk = pl.cdiv(blocks_total, num_chunks)
        needs_clamp = blocks_per_chunk * num_chunks != blocks_total

        def in_index_map(c, i):
            b = c * blocks_per_chunk + i
            if needs_clamp:
                # Phantom trailing block of the last chunk re-reads the last
                # valid block; its contribution is fully masked in-kernel.
                b = jnp.minimum(b, blocks_total - 1)
            return (b, 0)

        cost = pl.CostEstimate(
            flops=8 * aligned_n,
            transcendentals=2 * aligned_n,
            bytes_accessed=2 * aligned_n * itemsize
            + num_chunks * _SUBLANES * _LANES * 4,
        )

        partials = pl.pallas_call(
            _make_rmsle_sumsq_kernel(rows, block_rows, sub_rows),
            out_shape=jax.ShapeDtypeStruct(
                (num_chunks, _SUBLANES, _LANES), jnp.float32),
            grid_spec=pltpu.PrefetchScalarGridSpec(
                num_scalar_prefetch=0,
                grid=(num_chunks, blocks_per_chunk),
                in_specs=[
                    pl.BlockSpec((block_rows, _LANES), in_index_map),
                    pl.BlockSpec((block_rows, _LANES), in_index_map),
                ],
                out_specs=pl.BlockSpec((1, _SUBLANES, _LANES),
                                       lambda c, i: (c, 0, 0)),
            ),
            compiler_params=pltpu.CompilerParams(
                dimension_semantics=("parallel", "arbitrary"),
                vmem_limit_bytes=_VMEM_LIMIT_BYTES,
            ),
            cost_estimate=cost,
        )(p2, t2)

        sum_sq = sum_sq + jnp.sum(partials)

    if aligned_n < total_n:
        # Ragged tail (< chunk elements): fold with a tiny plain-JAX sum
        # instead of a full-array pad copy.
        tp = flat_p[aligned_n:].astype(jnp.float32)
        tt = flat_t[aligned_n:].astype(jnp.float32)
        dt = jnp.log1p(tp) - jnp.log1p(tt)
        sum_sq = sum_sq + jnp.sum(dt * dt)

    return jnp.sqrt(sum_sq / total_n)


if __name__ == "__main__":
    key = jax.random.PRNGKey(0)
    kp, kt = jax.random.split(key)

    # Small NCHW-shaped inputs, non-negative (log1p domain, typical RMSLE use).
    shape = (2, 4, 16, 16)
    predict = jax.random.uniform(kp, shape, dtype=jnp.float32) * 10.0
    target = jax.random.uniform(kt, shape, dtype=jnp.float32) * 10.0

    loss = jax.block_until_ready(rmsle_loss(predict, target))

    # Pure-JAX reference check.
    ref = jnp.sqrt(jnp.mean((jnp.log1p(predict) - jnp.log1p(target)) ** 2))
    assert jnp.allclose(loss, ref, rtol=1e-5, atol=1e-6), (loss, ref)

    print("KERNEL_OK")
</pallas_src>

<mosaic_0001>
module attributes {stable_mosaic.version = 11 : i64} {
  func.func @kernel(%arg0: i32, %arg1: i32, %arg2: memref<16x128xf32, #tpu.memory_space<vmem>>, %arg3: memref<16x128xf32, #tpu.memory_space<vmem>>, %arg4: memref<1x8x128xf32, #tpu.memory_space<vmem>>) attributes {dimension_semantics = [#tpu.dimension_semantics<parallel>, #tpu.dimension_semantics<arbitrary>], iteration_bounds = array<i64: 1, 1>, scalar_prefetch = 0 : i64, scratch_operands = 0 : i64, tpu.core_type = #tpu.core_type<tc>, window_params = [{transform_indices = @transform_0, window_bounds = array<i64: 16, 128>}, {transform_indices = @transform_1, window_bounds = array<i64: 16, 128>}, {transform_indices = @transform_2, window_bounds = array<i64: 1, 8, 128>}]} {
    %c1_i32 = arith.constant 1 : i32
    %0 = arith.muli %arg0, %c1_i32 : i32
    %1 = arith.addi %0, %arg1 : i32
    %c0_i32 = arith.constant 0 : i32
    %2 = arith.cmpi eq, %arg1, %c0_i32 : i32
    %3 = arith.extui %2 : i1 to i32
    %c0_i32_0 = arith.constant 0 : i32
    %4 = arith.cmpi ne, %3, %c0_i32_0 : i32
    scf.if %4 {
      %cst = arith.constant 0.000000e+00 : f32
      %13 = vector.broadcast %cst : f32 to vector<1x8x128xf32>
      %c0 = arith.constant 0 : index
      %c0_5 = arith.constant 0 : index
      %c0_6 = arith.constant 0 : index
      %14 = vector.load %arg4[%c0, %c0_5, %c0_6] : memref<1x8x128xf32, #tpu.memory_space<vmem>>, vector<1x8x128xf32>
      tpu.vector_store %arg4[%c0, %c0_5, %c0_6], %13 {strides = array<i32>} : memref<1x8x128xf32, #tpu.memory_space<vmem>>, vector<1x8x128xf32>,
    } else {
    }
    %c1_i32_1 = arith.constant 1 : i32
    %5 = arith.addi %1, %c1_i32_1 : i32
    %c16_i32 = arith.constant 16 : i32
    %6 = arith.muli %5, %c16_i32 : i32
    %c16_i32_2 = arith.constant 16 : i32
    %7 = arith.cmpi sle, %6, %c16_i32_2 : i32
    %8 = arith.extui %7 : i1 to i32
    %c0_i32_3 = arith.constant 0 : i32
    %9 = arith.cmpi ne, %8, %c0_i32_3 : i32
    scf.if %9 {
      %cst = arith.constant 0.000000e+00 : f32
      %13 = vector.broadcast %cst : f32 to vector<8x128xf32>
      %c0_i32_5 = arith.constant 0 : i32
      %c16_i32_6 = arith.constant 16 : i32
      %14 = arith.muli %c0_i32_5, %c16_i32_6 : i32
      %15 = tpu.assume_multiple %14, 16 : i32
      %16 = arith.index_cast %15 : i32 to index
      %c0 = arith.constant 0 : index
      %17 = vector.load %arg2[%16, %c0] : memref<16x128xf32, #tpu.memory_space<vmem>>, vector<16x128xf32>
      %18 = arith.index_cast %15 : i32 to index
      %c0_7 = arith.constant 0 : index
      %19 = vector.load %arg3[%18, %c0_7] : memref<16x128xf32, #tpu.memory_space<vmem>>, vector<16x128xf32>
      %cst_8 = arith.constant 1.000000e+00 : f32
      %20 = vector.broadcast %cst_8 : f32 to vector<16x128xf32>
      %21 = arith.addf %20, %17 : vector<16x128xf32>
      %cst_9 = arith.constant 1.000000e+00 : f32
      %22 = vector.broadcast %cst_9 : f32 to vector<16x128xf32>
      %23 = arith.addf %22, %19 : vector<16x128xf32>
      %24 = arith.divf %21, %23 : vector<16x128xf32>
      %25 = math.log %24 : vector<16x128xf32>
      %26 = arith.mulf %25, %25 : vector<16x128xf32>
      %27 = vector.shape_cast %26 : vector<16x128xf32> to vector<2x8x128xf32>
      %cst_10 = arith.constant dense<0.000000e+00> : vector<8x128xf32>
      %28 = vector.multi_reduction <add>, %27, %cst_10 [0] : vector<2x8x128xf32> to vector<8x128xf32>
      %29 = arith.addf %13, %28 : vector<8x128xf32>
      %c1_i32_11 = arith.constant 1 : i32
      %c0_12 = arith.constant 0 : index
      %c0_13 = arith.constant 0 : index
      %c0_14 = arith.constant 0 : index
      %30 = vector.load %arg4[%c0_12, %c0_13, %c0_14] : memref<1x8x128xf32, #tpu.memory_space<vmem>>, vector<1x8x128xf32>
      %31 = vector.shape_cast %30 : vector<1x8x128xf32> to vector<8x128xf32>
      %32 = arith.addf %31, %29 : vector<8x128xf32>
      %c0_15 = arith.constant 0 : index
      %c0_16 = arith.constant 0 : index
      %c0_17 = arith.constant 0 : index
      %33 = vector.load %arg4[%c0_15, %c0_16, %c0_17] : memref<1x8x128xf32, #tpu.memory_space<vmem>>, vector<1x8x128xf32>
      %34 = vector.shape_cast %33 : vector<1x8x128xf32> to vector<8x128xf32>
      %35 = vector.shape_cast %32 : vector<8x128xf32> to vector<1x8x128xf32>
      tpu.vector_store %arg4[%c0_15, %c0_16, %c0_17], %35 {strides = array<i32>} : memref<1x8x128xf32, #tpu.memory_space<vmem>>, vector<1x8x128xf32>,
    } else {
    }
    %true = arith.constant true
    %10 = arith.xori %7, %true : i1
    %11 = arith.extui %10 : i1 to i32
    %c0_i32_4 = arith.constant 0 : i32
    %12 = arith.cmpi ne, %11, %c0_i32_4 : i32
    scf.if %12 {
      %cst = arith.constant 0.000000e+00 : f32
      %13 = vector.broadcast %cst : f32 to vector<8x128xf32>
      %c0_i32_5 = arith.constant 0 : i32
      %c16_i32_6 = arith.constant 16 : i32
      %14 = arith.muli %c0_i32_5, %c16_i32_6 : i32
      %15 = tpu.assume_multiple %14, 16 : i32
      %16 = arith.index_cast %15 : i32 to index
      %c0 = arith.constant 0 : index
      %17 = vector.load %arg2[%16, %c0] : memref<16x128xf32, #tpu.memory_space<vmem>>, vector<16x128xf32>
      %18 = arith.index_cast %15 : i32 to index
      %c0_7 = arith.constant 0 : index
      %19 = vector.load %arg3[%18, %c0_7] : memref<16x128xf32, #tpu.memory_space<vmem>>, vector<16x128xf32>
      %cst_8 = arith.constant 1.000000e+00 : f32
      %20 = vector.broadcast %cst_8 : f32 to vector<16x128xf32>
      %21 = arith.addf %20, %17 : vector<16x128xf32>
      %cst_9 = arith.constant 1.000000e+00 : f32
      %22 = vector.broadcast %cst_9 : f32 to vector<16x128xf32>
      %23 = arith.addf %22, %19 : vector<16x128xf32>
      %24 = arith.divf %21, %23 : vector<16x128xf32>
      %25 = math.log %24 : vector<16x128xf32>
      %26 = arith.mulf %25, %25 : vector<16x128xf32>
      %27 = tpu.iota {dimensions = array<i32: 0>} : vector<16x128xi32>
      %c16_i32_10 = arith.constant 16 : i32
      %28 = arith.muli %1, %c16_i32_10 : i32
      %c16_i32_11 = arith.constant 16 : i32
      %29 = arith.muli %c0_i32_5, %c16_i32_11 : i32
      %30 = arith.addi %28, %29 : i32
      %31 = vector.broadcast %30 : i32 to vector<16x128xi32>
      %32 = arith.addi %31, %27 : vector<16x128xi32>
      %c16_i32_12 = arith.constant 16 : i32
      %33 = vector.broadcast %c16_i32_12 : i32 to vector<16x128xi32>
      %34 = arith.cmpi slt, %32, %33 : vector<16x128xi32>
      %cst_13 = arith.constant 0.000000e+00 : f32
      %35 = vector.broadcast %cst_13 : f32 to vector<16x128xf32>
      %36 = arith.select %34, %26, %35 : vector<16x128xi1>, vector<16x128xf32>
      %37 = vector.shape_cast %36 : vector<16x128xf32> to vector<2x8x128xf32>
      %cst_14 = arith.constant dense<0.000000e+00> : vector<8x128xf32>
      %38 = vector.multi_reduction <add>, %37, %cst_14 [0] : vector<2x8x128xf32> to vector<8x128xf32>
      %39 = arith.addf %13, %38 : vector<8x128xf32>
      %c1_i32_15 = arith.constant 1 : i32
      %c0_16 = arith.constant 0 : index
      %c0_17 = arith.constant 0 : index
      %c0_18 = arith.constant 0 : index
      %40 = vector.load %arg4[%c0_16, %c0_17, %c0_18] : memref<1x8x128xf32, #tpu.memory_space<vmem>>, vector<1x8x128xf32>
      %41 = vector.shape_cast %40 : vector<1x8x128xf32> to vector<8x128xf32>
      %42 = arith.addf %41, %39 : vector<8x128xf32>
      %c0_19 = arith.constant 0 : index
      %c0_20 = arith.constant 0 : index
      %c0_21 = arith.constant 0 : index
      %43 = vector.load %arg4[%c0_19, %c0_20, %c0_21] : memref<1x8x128xf32, #tpu.memory_space<vmem>>, vector<1x8x128xf32>
      %44 = vector.shape_cast %43 : vector<1x8x128xf32> to vector<8x128xf32>
      %45 = vector.shape_cast %42 : vector<8x128xf32> to vector<1x8x128xf32>
      tpu.vector_store %arg4[%c0_19, %c0_20, %c0_21], %45 {strides = array<i32>} : memref<1x8x128xf32, #tpu.memory_space<vmem>>, vector<1x8x128xf32>,
    } else {
    }
    return
  }
  func.func @transform_0(%arg0: i32, %arg1: i32) -> (i32, i32) {
    %c1_i32 = arith.constant 1 : i32
    %0 = arith.muli %arg0, %c1_i32 : i32
    %1 = arith.addi %0, %arg1 : i32
    %c0_i32 = arith.constant 0 : i32
    %c0_i32_0 = arith.constant 0 : i32
    return %1, %c0_i32 : i32, i32
  }
  func.func @transform_1(%arg0: i32, %arg1: i32) -> (i32, i32) {
    %c1_i32 = arith.constant 1 : i32
    %0 = arith.muli %arg0, %c1_i32 : i32
    %1 = arith.addi %0, %arg1 : i32
    %c0_i32 = arith.constant 0 : i32
    %c0_i32_0 = arith.constant 0 : i32
    return %1, %c0_i32 : i32, i32
  }
  func.func @transform_2(%arg0: i32, %arg1: i32) -> (i32, i32, i32) {
    %c0_i32 = arith.constant 0 : i32
    %c0_i32_0 = arith.constant 0 : i32
    %c0_i32_1 = arith.constant 0 : i32
    return %arg0, %c0_i32, %c0_i32_0 : i32, i32, i32
  }
}

</mosaic_0001>

<llo_original>
// kernel: tpu_custom_call.1
$region0: #{tpu_custom_call.1}
  #allocation0 [shape = 'u32[]', space=smem, size = 0x4, offset = 0x4, fixed_abs, tag = 'smem constant byte address 0x4 - core index']
  #allocation1 [shape = 'u32[144,128]{1,0:T(1,128)}', space=vmem, size = 0x12000, scoped, tag = 'internal scratch']
  %s0 = inlined_call_operand.hbm [shape: f32[16,128], index: 0, kind: input, shape index: {}]
  %s1 = inlined_call_operand.hbm [shape: f32[16,128], index: 1, kind: input, shape index: {}]
  %s2 = inlined_call_operand.hbm [shape: f32[1,8,128], index: 2, kind: output, shape index: {}]
  %s3 = sld [smem:[#allocation0]]
  $region38: #{tpu_custom_call.1} parent=0
    _
  %s5 = ssub.s32 1, %s3
  %s6 = scalar_select 0, %s5, %s3
  $region1: #{tpu_custom_call.1} parent=0
    #allocation2 [shape = 'u8[8192]{0}', space=vmem, size = 0x2000, scoped, tag = 'input window, operand 0, single buffered']
    #allocation3 [shape = 's32[1]{0}', space=sflag, size = 0x4, scoped, tag = 'scoped memory for tpu_custom_call.1']
    #allocation4 [shape = 's32[1]{0}', space=sflag, size = 0x4, scoped, tag = 'scoped memory for tpu_custom_call.1']
    #allocation5 [shape = 'u8[8192]{0}', space=vmem, size = 0x2000, scoped, tag = 'input window, operand 1, single buffered']
    #allocation6 [shape = 's32[1]{0}', space=sflag, size = 0x4, scoped, tag = 'scoped memory for tpu_custom_call.1']
    #allocation7 [shape = 'u8[4096]{0}', space=vmem, size = 0x1000, scoped, tag = 'output window, operand 0, single buffered']
    %7 = vsyncpa [#allocation3], 0
    %8 = vsyncpa [#allocation6], 0
    %9 = vsyncpa [#allocation4], 0
    // Predicated region
    $region2: #{tpu_custom_call.1} parent=1 // pred_check
      _
    $region3: #{tpu_custom_call.1} parent=1 // pred_check_branch
      %11 = sbr.rel (0) target = $region5
    $region4: #{tpu_custom_call.1} parent=1 // pred_region
      %s12 = sadd.s32 0, 0
      %s13 = smul.u32 2, %s12
      %s15 = ssub.s32 256, 256
      %16 = vsyncadd [#allocation3], %s15
      %s17 = smul.addr %s13, 128
      %s18 = scalar_lea.hbm %s0, %s17
      %s19 = sshll.u32 [#allocation2], 4
      %s20 = int_to_ptr.vmem [resolvable:$true] %s19
      %25 = dma.hbm_to_vmem [thread:$0]  %s18, 256, %s20, [#allocation3], 128, 128, 8
    $region5: #{tpu_custom_call.1} parent=1 // pred_fallthru
      _
    // Predicated region
    $region6: #{tpu_custom_call.1} parent=1 // pred_check
      _
    $region7: #{tpu_custom_call.1} parent=1 // pred_check_branch
      %27 = sbr.rel (0) target = $region9
    $region8: #{tpu_custom_call.1} parent=1 // pred_region
      %s28 = sadd.s32 0, 0
      %s29 = smul.u32 2, %s28
      %s31 = ssub.s32 256, 256
      %32 = vsyncadd [#allocation6], %s31
      %s33 = smul.addr %s29, 128
      %s34 = scalar_lea.hbm %s1, %s33
      %s35 = sshll.u32 [#allocation5], 4
      %s36 = int_to_ptr.vmem [resolvable:$true] %s35
      %41 = dma.hbm_to_vmem [thread:$0]  %s34, 256, %s36, [#allocation6], 128, 128, 8
    $region9: #{tpu_custom_call.1} parent=1 // pred_fallthru
      _
    // Predicated region
    $region10: #{tpu_custom_call.1} parent=1 // pred_check
      _
    $region11: #{tpu_custom_call.1} parent=1 // pred_check_branch
      %43 = sbr.rel (0) target = $region13
    $region12: #{tpu_custom_call.1} parent=1 // pred_region
      %44 = dma.done [#allocation3], 256
    $region13: #{tpu_custom_call.1} parent=1 // pred_fallthru
      _
    // Predicated region
    $region14: #{tpu_custom_call.1} parent=1 // pred_check
      _
    $region15: #{tpu_custom_call.1} parent=1 // pred_check_branch
      %46 = sbr.rel (0) target = $region17
    $region16: #{tpu_custom_call.1} parent=1 // pred_region
      %47 = dma.done [#allocation6], 256
    $region17: #{tpu_custom_call.1} parent=1 // pred_fallthru
      _
    %s48 = sadd.s32 0, 0
    %s49 = smul.u32 2, %s48
    %s50 = sadd.s32 0, 0
    %s51 = smul.u32 2, %s50
    %s52 = sadd.s32 0, 0
    %p53 = scmp.eq.s32.totalorder 0, 0
    // Predicated region
    $region18: #{tpu_custom_call.1} parent=1 // pred_check
      %p54 = pneg %p53
    $region19: #{tpu_custom_call.1} parent=1 // pred_check_branch
      %56 = sbr.rel (%p54) target = $region21
    $region20: #{tpu_custom_call.1} parent=1 // pred_region
      %57 = vst [vmem:[#allocation7] sm:$0xff] 0.0
    $region21: #{tpu_custom_call.1} parent=1 // pred_fallthru
      _
    %s58 = sadd.s32 %s52, 1
    %s59 = smul.u32 %s58, 16
    %p60 = scmp.le.s32.totalorder %s59, 16
    // Predicated region
    $region22: #{tpu_custom_call.1} parent=1 // pred_check
      %p61 = pneg %p60
    $region23: #{tpu_custom_call.1} parent=1 // pred_check_branch
      %63 = sbr.rel (%p61) target = $region25
    $region24: #{tpu_custom_call.1} parent=1 // pred_region
      %v64 = vld [vmem:[#allocation2] sm:$0xff]
      %v65 = vld [vmem:[#allocation2 + $0x8] sm:$0xff]
      %v66 = vld [vmem:[#allocation5] sm:$0xff]
      %v67 = vld [vmem:[#allocation5 + $0x8] sm:$0xff]
      %v68 = vadd.f32 %v64, 1.0
      %v69 = vadd.f32 %v65, 1.0
      %v70 = vadd.f32 %v66, 1.0
      %v71 = vadd.f32 %v67, 1.0
      %v72 = vrcp.pop %v70
      %v73 = vmul.f32 %v68, %v72
      %v74 = vrcp.pop %v71
      %v75 = vmul.f32 %v69, %v74
      %v76 = vlog2.pop %v73
      %v77 = vmul.f32 %v76, 0.6931472
      %v78 = vlog2.pop %v75
      %v79 = vmul.f32 %v78, 0.6931472
      %v80 = vmul.f32 %v77, %v77
      %v81 = vmul.f32 %v79, %v79
      %v82 = vadd.f32 %v80, %v81
      %v83 = vadd.f32 %v82, 0.0
      %v84 = vld [vmem:[#allocation7] sm:$0xff]
      %v85 = vadd.f32 %v84, %v83
      %86 = vst [vmem:[#allocation7] sm:$0xff] %v85
    $region25: #{tpu_custom_call.1} parent=1 // pred_fallthru
      _
    %p87 = scmp.gt.s32.totalorder %s59, 16
    // Predicated region
    $region26: #{tpu_custom_call.1} parent=1 // pred_check
      %p88 = pneg %p87
    $region27: #{tpu_custom_call.1} parent=1 // pred_check_branch
      %90 = sbr.rel (%p88) target = $region29
    $region28: #{tpu_custom_call.1} parent=1 // pred_region
      %v91 = vld [vmem:[#allocation2] sm:$0xff]
      %v92 = vld [vmem:[#allocation2 + $0x8] sm:$0xff]
      %v93 = vld [vmem:[#allocation5] sm:$0xff]
      %v94 = vld [vmem:[#allocation5 + $0x8] sm:$0xff]
      %v95 = vadd.f32 %v91, 1.0
      %v96 = vadd.f32 %v92, 1.0
      %v97 = vadd.f32 %v93, 1.0
      %v98 = vadd.f32 %v94, 1.0
      %v99 = vrcp.pop %v97
      %v100 = vmul.f32 %v95, %v99
      %v101 = vrcp.pop %v98
      %v102 = vmul.f32 %v96, %v101
      %v103 = vlog2.pop %v100
      %v104 = vmul.f32 %v103, 0.6931472
      %v105 = vlog2.pop %v102
      %v106 = vmul.f32 %v105, 0.6931472
      %v107 = vmul.f32 %v104, %v104
      %v108 = vmul.f32 %v106, %v106
      %v109 = vlaneseq
      %v110 = vshrl.u32 %v109, 7
      %v111 = vadd.s32 %v110, 8
      %s112 = smul.u32 %s52, 16
      %v113 = vstv %s112
      %v114 = vadd.s32 %v113, %v110
      %v115 = vadd.s32 %v113, %v111
      %vm116 = vcmp.lt.s32.totalorder %v114, 16
      %vm117 = vcmp.lt.s32.totalorder %v115, 16
      %v118 = vsel %vm116, %v107, 0.0
      %v119 = vsel %vm117, %v108, 0.0
      %v120 = vadd.f32 %v118, %v119
      %v121 = vadd.f32 %v120, 0.0
      %v122 = vld [vmem:[#allocation7] sm:$0xff]
      %v123 = vadd.f32 %v122, %v121
      %124 = vst [vmem:[#allocation7] sm:$0xff] %v123
    $region29: #{tpu_custom_call.1} parent=1 // pred_fallthru
      _
    // Predicated region
    $region30: #{tpu_custom_call.1} parent=1 // pred_check
      _
    $region31: #{tpu_custom_call.1} parent=1 // pred_check_branch
      %126 = sbr.rel (0) target = $region33
    $region32: #{tpu_custom_call.1} parent=1 // pred_region
      %s128 = ssub.s32 128, 128
      %129 = vsyncadd [#allocation4], %s128
      %s131 = sshll.u32 [#allocation7], 4
      %s132 = int_to_ptr.vmem [resolvable:$true] %s131
      %134 = dma.vmem_to_hbm [thread:$0]  %s132, 128, %s2, [#allocation4]
    $region33: #{tpu_custom_call.1} parent=1 // pred_fallthru
      _
    // Predicated region
    $region34: #{tpu_custom_call.1} parent=1 // pred_check
      _
    $region35: #{tpu_custom_call.1} parent=1 // pred_check_branch
      %136 = sbr.rel (0) target = $region37
    $region36: #{tpu_custom_call.1} parent=1 // pred_region
      %137 = dma.done [#allocation4], 128
    $region37: #{tpu_custom_call.1} parent=1 // pred_fallthru
      _
    %138 = vsyncpa [#allocation3], 1
    %139 = vsyncpa [#allocation6], 1
    %140 = vsyncpa [#allocation4], 1

</llo_original>
